<compile_context>
chip_gen: v7x
topology: tpu7x:2x2x1
jax: 0.10.0
libtpu: 0.0.40
codegen_flags: <defaults>
</compile_context>

<pallas_src>
import jax
import jax.numpy as jnp
from jax.experimental import pallas as pl
from jax.experimental.pallas import tpu as pltpu


def _linear_embedding_bag_kernel(idx_ref, emb_ref, w_ref, b_ref, out_ref, acc_ref):
    k = pl.program_id(1)
    nk = pl.num_programs(1)
    TB, S = idx_ref.shape          # batch tile, padded sequence length
    TK, _E = emb_ref.shape         # vocab tile, embedding dim

    @pl.when(k == 0)
    def _init():
        acc_ref[...] = jnp.zeros_like(acc_ref)

    # Local token ids for this vocab tile: one (TB, S) subtract instead of adding
    # k*TK to a (TB, TK) iota every grid step.
    idx_local = idx_ref[...] - k * TK                                  # (TB, S) int32

    # Counts are small non-negative integers; bf16 represents them exactly up to 256.
    cnt_dtype = jnp.bfloat16 if S <= 256 else jnp.float32
    itemsize = jnp.dtype(cnt_dtype).itemsize

    # Chunk the one-hot/counts build over lanes so it stays register-resident
    # (~<= 64 KiB ~= 16 vregs) even for large (TB, TK) tiles.
    tkc = max(128, ((64 * 1024) // (TB * itemsize)) // 128 * 128)

    c0 = 0
    while c0 < TK:                                                     # static at trace time
        w = min(tkc, TK - c0)
        iota_c = jax.lax.broadcasted_iota(jnp.int32, (TB, w), 1) + c0  # compile-time const
        counts = jnp.zeros((TB, w), dtype=cnt_dtype)
        for s in range(S):
            counts = counts + (idx_local[:, s:s + 1] == iota_c).astype(cnt_dtype)
        # Partial sum of gathered rows on the MXU: counts (bf16) @ emb chunk (bf16),
        # f32 accumulation. Counts are exact small integers -> exact products.
        acc_ref[...] += jnp.dot(counts, emb_ref[pl.ds(c0, w), :],
                                preferred_element_type=jnp.float32)
        c0 += w

    @pl.when(k == nk - 1)
    def _finalize():
        text_emb = acc_ref[...] * (1.0 / S)       # exact f32 mean (mode='mean')
        # Final projection kept in f32 (weights are tiny + broadcast): only the
        # bf16 table rounding separates this from the pure-f32 PyTorch module.
        out = jnp.dot(text_emb, w_ref[...],
                      preferred_element_type=jnp.float32) + b_ref[...]
        out_ref[...] = out.astype(out_ref.dtype)


def _round_up(x, m):
    return pl.cdiv(x, m) * m


def linear_embedding_bag_forward(padded_text, _lengths, emb_table, fc_weight, fc_bias,
                                 *, batch_tile=256, vocab_tile=1024):
    """Mirrors LinearEmbeddingBagModel.forward(padded_text, _lengths) (embedded_input=False)."""
    del _lengths  # unused by the PyTorch forward as well
    B, S = padded_text.shape
    V, E = emb_table.shape
    C = fc_weight.shape[0]

    # ---- batch tile: large for MXU M-dim / fewer table re-streams, but keep >=2 tiles
    #      when B allows so both v7x TensorCores get work on the parallel axis.
    tb = max(8, min(_round_up(batch_tile, 8), _round_up(B, 8)))
    if _round_up(B, tb) // tb < 2 and B > 8:
        tb = max(8, _round_up(pl.cdiv(B, 2), 8))
    B_pad = _round_up(B, tb)

    # ---- vocab tile: big K for the MXU / few grid steps, clamped so the
    #      double-buffered bf16 table tile stays <= ~24 MiB (v7x-safe).
    V_pad128 = _round_up(V, 128)
    tk = min(_round_up(vocab_tile, 128), V_pad128)
    while tk > 128 and 2 * tk * E * 2 > 24 * 1024 * 1024:
        tk = max(128, (tk // 2) // 128 * 128)
    V_pad = _round_up(V_pad128, tk)

    # Lane-dense output: pad the class dim to a multiple of 128 (unmasked stores).
    C_pad = _round_up(C, 128)

    # ---- operands
    idx = padded_text.astype(jnp.int32)
    if B_pad != B:
        idx = jnp.pad(idx, ((0, B_pad - B), (0, 0)))     # pad rows read table row 0; sliced off

    emb = emb_table.astype(jnp.bfloat16)                 # dominant HBM stream -> bf16
    if V_pad != V:
        emb = jnp.pad(emb, ((0, V_pad - V), (0, 0)))     # zero rows, never hit by valid ids

    w_t = jnp.zeros((E, C_pad), jnp.float32).at[:, :C].set(fc_weight.astype(jnp.float32).T)
    b2 = jnp.zeros((1, C_pad), jnp.float32).at[:, :C].set(fc_bias.astype(jnp.float32))

    # ---- VMEM budget (double buffers for pipelined operands), capped at v7x's 64 MiB.
    vmem_est = (2 * tb * S * 4            # token ids
                + 2 * tk * E * 2          # bf16 table tile
                + 2 * E * C_pad * 4       # fc weight^T (broadcast)
                + 2 * C_pad * 4           # bias
                + 2 * tb * C_pad * 4      # output tile
                + tb * E * 4)             # f32 accumulator scratch
    vmem_limit = int(min(64 * 1024 * 1024, max(32 * 1024 * 1024, 2 * vmem_est)))

    grid = (B_pad // tb, V_pad // tk)

    out = pl.pallas_call(
        _linear_embedding_bag_kernel,
        out_shape=jax.ShapeDtypeStruct((B_pad, C_pad), jnp.float32),
        grid_spec=pltpu.PrefetchScalarGridSpec(
            num_scalar_prefetch=0,
            grid=grid,
            in_specs=[
                pl.BlockSpec((tb, S), lambda i, k: (i, 0)),       # token ids, batch tile
                pl.BlockSpec((tk, E), lambda i, k: (k, 0)),       # bf16 table, vocab tile
                pl.BlockSpec((E, C_pad), lambda i, k: (0, 0)),    # fc weight^T (broadcast)
                pl.BlockSpec((1, C_pad), lambda i, k: (0, 0)),    # fc bias (broadcast)
            ],
            out_specs=pl.BlockSpec((tb, C_pad), lambda i, k: (i, 0)),
            scratch_shapes=[pltpu.VMEM((tb, E), jnp.float32)],    # text_embedding accumulator
        ),
        compiler_params=pltpu.CompilerParams(
            dimension_semantics=("parallel", "arbitrary"),
            vmem_limit_bytes=vmem_limit,
        ),
    )(idx, emb, w_t, b2)

    return out[:B, :C]


if __name__ == "__main__":
    # Small shapes, but big enough to exercise both grid axes
    # (2 batch tiles x 2 vocab tiles with the default tb/tk selection).
    VOCAB = 2048
    EMB_DIM = 64
    NUM_CLASS = 8
    BATCH = 16
    SEQ = 8

    key = jax.random.PRNGKey(0)
    k_idx, k_emb, k_w, k_b = jax.random.split(key, 4)

    # Deterministic parameter init (matching PyTorch init distributions).
    emb_table = jax.random.normal(k_emb, (VOCAB, EMB_DIM), dtype=jnp.float32)   # EmbeddingBag ~ N(0,1)
    bound = 1.0 / (EMB_DIM ** 0.5)
    fc_weight = jax.random.uniform(k_w, (NUM_CLASS, EMB_DIM), jnp.float32, -bound, bound)
    fc_bias = jax.random.uniform(k_b, (NUM_CLASS,), jnp.float32, -bound, bound)

    padded_text = jax.random.randint(k_idx, (BATCH, SEQ), 0, VOCAB, dtype=jnp.int32)
    lengths = jnp.full((BATCH,), SEQ, dtype=jnp.int32)  # ignored by forward; kept for signature parity

    out = linear_embedding_bag_forward(padded_text, lengths, emb_table, fc_weight, fc_bias)
    out = jax.block_until_ready(out)
    assert out.shape == (BATCH, NUM_CLASS)

    # Tight check vs a reference that applies the same bf16 rounding to the table only.
    emb_bf = emb_table.astype(jnp.bfloat16).astype(jnp.float32)
    ref_bf16_table = jnp.mean(emb_bf[padded_text], axis=1) @ fc_weight.T + fc_bias
    assert jnp.allclose(out, ref_bf16_table, atol=1e-3, rtol=1e-3)

    # Looser sanity check vs the pure-f32 module semantics (gather -> mean -> linear).
    ref_f32 = jnp.mean(emb_table[padded_text], axis=1) @ fc_weight.T + fc_bias
    assert jnp.allclose(out, ref_f32, atol=5e-2, rtol=5e-2)

    print("KERNEL_OK")
</pallas_src>

<mosaic_0001>
module attributes {stable_mosaic.version = 11 : i64} {
  func.func @_linear_embedding_bag_kernel(%arg0: i32, %arg1: i32, %arg2: memref<8x8xi32, #tpu.memory_space<vmem>>, %arg3: memref<1024x64xbf16, #tpu.memory_space<vmem>>, %arg4: memref<64x128xf32, #tpu.memory_space<vmem>>, %arg5: memref<1x128xf32, #tpu.memory_space<vmem>>, %arg6: memref<8x128xf32, #tpu.memory_space<vmem>>, %arg7: memref<8x64xf32, #tpu.memory_space<vmem>>) attributes {dimension_semantics = [#tpu.dimension_semantics<parallel>, #tpu.dimension_semantics<arbitrary>], iteration_bounds = array<i64: 2, 2>, scalar_prefetch = 0 : i64, scratch_operands = 1 : i64, tpu.core_type = #tpu.core_type<tc>, window_params = [{transform_indices = @transform_0, window_bounds = array<i64: 8, 8>}, {transform_indices = @transform_1, window_bounds = array<i64: 1024, 64>}, {pipeline_mode = #tpu.pipeline_mode<synchronous>, transform_indices = @transform_2, window_bounds = array<i64: 64, 128>}, {pipeline_mode = #tpu.pipeline_mode<synchronous>, transform_indices = @transform_3, window_bounds = array<i64: 1, 128>}, {transform_indices = @transform_4, window_bounds = array<i64: 8, 128>}]} {
    %c0_i32 = arith.constant 0 : i32
    %0 = arith.cmpi eq, %arg1, %c0_i32 : i32
    %1 = arith.extui %0 : i1 to i32
    %c0_i32_0 = arith.constant 0 : i32
    %2 = arith.cmpi ne, %1, %c0_i32_0 : i32
    scf.if %2 {
      %cst_11 = arith.constant 0.000000e+00 : f32
      %75 = vector.broadcast %cst_11 : f32 to vector<8x64xf32>
      %c0_12 = arith.constant 0 : index
      %c0_13 = arith.constant 0 : index
      %76 = vector.load %arg7[%c0_12, %c0_13] : memref<8x64xf32, #tpu.memory_space<vmem>>, vector<8x64xf32>
      tpu.vector_store %arg7[%c0_12, %c0_13], %75 {strides = array<i32>} : memref<8x64xf32, #tpu.memory_space<vmem>>, vector<8x64xf32>,
    } else {
    }
    %c0 = arith.constant 0 : index
    %c0_1 = arith.constant 0 : index
    %3 = vector.load %arg2[%c0, %c0_1] : memref<8x8xi32, #tpu.memory_space<vmem>>, vector<8x8xi32>
    %c1024_i32 = arith.constant 1024 : i32
    %4 = arith.muli %arg1, %c1024_i32 : i32
    %5 = vector.broadcast %4 : i32 to vector<8x8xi32>
    %6 = arith.subi %3, %5 : vector<8x8xi32>
    %7 = tpu.iota {dimensions = array<i32: 1>} : vector<8x1024xi32>
    %c0_i32_2 = arith.constant 0 : i32
    %8 = vector.broadcast %c0_i32_2 : i32 to vector<8x1024xi32>
    %9 = arith.addi %7, %8 : vector<8x1024xi32>
    %cst = arith.constant 0.000000e+00 : bf16
    %10 = vector.broadcast %cst : bf16 to vector<8x1024xbf16>
    %11 = vector.extract_strided_slice %6 {offsets = [0, 0], sizes = [8, 1], strides = [1, 1]} : vector<8x8xi32> to vector<8x1xi32>
    %12 = vector.broadcast %11 : vector<8x1xi32> to vector<8x1024xi32>
    %13 = arith.cmpi eq, %12, %9 : vector<8x1024xi32>
    %14 = arith.extui %13 : vector<8x1024xi1> to vector<8x1024xi32>
    %15 = arith.sitofp %14 : vector<8x1024xi32> to vector<8x1024xf32>
    %16 = arith.truncf %15 : vector<8x1024xf32> to vector<8x1024xbf16>
    %17 = arith.addf %10, %16 : vector<8x1024xbf16>
    %18 = vector.extract_strided_slice %6 {offsets = [0, 1], sizes = [8, 1], strides = [1, 1]} : vector<8x8xi32> to vector<8x1xi32>
    %19 = vector.broadcast %18 : vector<8x1xi32> to vector<8x1024xi32>
    %20 = arith.cmpi eq, %19, %9 : vector<8x1024xi32>
    %21 = arith.extui %20 : vector<8x1024xi1> to vector<8x1024xi32>
    %22 = arith.sitofp %21 : vector<8x1024xi32> to vector<8x1024xf32>
    %23 = arith.truncf %22 : vector<8x1024xf32> to vector<8x1024xbf16>
    %24 = arith.addf %17, %23 : vector<8x1024xbf16>
    %25 = vector.extract_strided_slice %6 {offsets = [0, 2], sizes = [8, 1], strides = [1, 1]} : vector<8x8xi32> to vector<8x1xi32>
    %26 = vector.broadcast %25 : vector<8x1xi32> to vector<8x1024xi32>
    %27 = arith.cmpi eq, %26, %9 : vector<8x1024xi32>
    %28 = arith.extui %27 : vector<8x1024xi1> to vector<8x1024xi32>
    %29 = arith.sitofp %28 : vector<8x1024xi32> to vector<8x1024xf32>
    %30 = arith.truncf %29 : vector<8x1024xf32> to vector<8x1024xbf16>
    %31 = arith.addf %24, %30 : vector<8x1024xbf16>
    %32 = vector.extract_strided_slice %6 {offsets = [0, 3], sizes = [8, 1], strides = [1, 1]} : vector<8x8xi32> to vector<8x1xi32>
    %33 = vector.broadcast %32 : vector<8x1xi32> to vector<8x1024xi32>
    %34 = arith.cmpi eq, %33, %9 : vector<8x1024xi32>
    %35 = arith.extui %34 : vector<8x1024xi1> to vector<8x1024xi32>
    %36 = arith.sitofp %35 : vector<8x1024xi32> to vector<8x1024xf32>
    %37 = arith.truncf %36 : vector<8x1024xf32> to vector<8x1024xbf16>
    %38 = arith.addf %31, %37 : vector<8x1024xbf16>
    %39 = vector.extract_strided_slice %6 {offsets = [0, 4], sizes = [8, 1], strides = [1, 1]} : vector<8x8xi32> to vector<8x1xi32>
    %40 = vector.broadcast %39 : vector<8x1xi32> to vector<8x1024xi32>
    %41 = arith.cmpi eq, %40, %9 : vector<8x1024xi32>
    %42 = arith.extui %41 : vector<8x1024xi1> to vector<8x1024xi32>
    %43 = arith.sitofp %42 : vector<8x1024xi32> to vector<8x1024xf32>
    %44 = arith.truncf %43 : vector<8x1024xf32> to vector<8x1024xbf16>
    %45 = arith.addf %38, %44 : vector<8x1024xbf16>
    %46 = vector.extract_strided_slice %6 {offsets = [0, 5], sizes = [8, 1], strides = [1, 1]} : vector<8x8xi32> to vector<8x1xi32>
    %47 = vector.broadcast %46 : vector<8x1xi32> to vector<8x1024xi32>
    %48 = arith.cmpi eq, %47, %9 : vector<8x1024xi32>
    %49 = arith.extui %48 : vector<8x1024xi1> to vector<8x1024xi32>
    %50 = arith.sitofp %49 : vector<8x1024xi32> to vector<8x1024xf32>
    %51 = arith.truncf %50 : vector<8x1024xf32> to vector<8x1024xbf16>
    %52 = arith.addf %45, %51 : vector<8x1024xbf16>
    %53 = vector.extract_strided_slice %6 {offsets = [0, 6], sizes = [8, 1], strides = [1, 1]} : vector<8x8xi32> to vector<8x1xi32>
    %54 = vector.broadcast %53 : vector<8x1xi32> to vector<8x1024xi32>
    %55 = arith.cmpi eq, %54, %9 : vector<8x1024xi32>
    %56 = arith.extui %55 : vector<8x1024xi1> to vector<8x1024xi32>
    %57 = arith.sitofp %56 : vector<8x1024xi32> to vector<8x1024xf32>
    %58 = arith.truncf %57 : vector<8x1024xf32> to vector<8x1024xbf16>
    %59 = arith.addf %52, %58 : vector<8x1024xbf16>
    %60 = vector.extract_strided_slice %6 {offsets = [0, 7], sizes = [8, 1], strides = [1, 1]} : vector<8x8xi32> to vector<8x1xi32>
    %61 = vector.broadcast %60 : vector<8x1xi32> to vector<8x1024xi32>
    %62 = arith.cmpi eq, %61, %9 : vector<8x1024xi32>
    %63 = arith.extui %62 : vector<8x1024xi1> to vector<8x1024xi32>
    %64 = arith.sitofp %63 : vector<8x1024xi32> to vector<8x1024xf32>
    %65 = arith.truncf %64 : vector<8x1024xf32> to vector<8x1024xbf16>
    %66 = arith.addf %59, %65 : vector<8x1024xbf16>
    %c0_3 = arith.constant 0 : index
    %c0_4 = arith.constant 0 : index
    %67 = vector.load %arg7[%c0_3, %c0_4] : memref<8x64xf32, #tpu.memory_space<vmem>>, vector<8x64xf32>
    %c0_5 = arith.constant 0 : index
    %c0_6 = arith.constant 0 : index
    %68 = vector.load %arg3[%c0_5, %c0_6] : memref<1024x64xbf16, #tpu.memory_space<vmem>>, vector<1024x64xbf16>
    %cst_7 = arith.constant dense<0.000000e+00> : vector<8x64xf32>
    %69 = tpu.matmul %66, %68, %cst_7 {dimension_numbers = #tpu.dot_dimension_numbers<[1], [0], [0], [1], [0, 0, 1, 1], [], []>} : vector<8x1024xbf16>, vector<1024x64xbf16>, vector<8x64xf32> -> vector<8x64xf32>
    %70 = arith.addf %67, %69 : vector<8x64xf32>
    %c0_8 = arith.constant 0 : index
    %c0_9 = arith.constant 0 : index
    %71 = vector.load %arg7[%c0_8, %c0_9] : memref<8x64xf32, #tpu.memory_space<vmem>>, vector<8x64xf32>
    tpu.vector_store %arg7[%c0_8, %c0_9], %70 {strides = array<i32>} : memref<8x64xf32, #tpu.memory_space<vmem>>, vector<8x64xf32>,
    %c1_i32 = arith.constant 1 : i32
    %72 = arith.cmpi eq, %arg1, %c1_i32 : i32
    %73 = arith.extui %72 : i1 to i32
    %c0_i32_10 = arith.constant 0 : i32
    %74 = arith.cmpi ne, %73, %c0_i32_10 : i32
    scf.if %74 {
      %c0_11 = arith.constant 0 : index
      %c0_12 = arith.constant 0 : index
      %75 = vector.load %arg7[%c0_11, %c0_12] : memref<8x64xf32, #tpu.memory_space<vmem>>, vector<8x64xf32>
      %cst_13 = arith.constant 1.250000e-01 : f32
      %76 = vector.broadcast %cst_13 : f32 to vector<8x64xf32>
      %77 = arith.mulf %75, %76 : vector<8x64xf32>
      %c0_14 = arith.constant 0 : index
      %c0_15 = arith.constant 0 : index
      %78 = vector.load %arg4[%c0_14, %c0_15] : memref<64x128xf32, #tpu.memory_space<vmem>>, vector<64x128xf32>
      %cst_16 = arith.constant dense<0.000000e+00> : vector<8x128xf32>
      %79 = tpu.matmul %77, %78, %cst_16 {dimension_numbers = #tpu.dot_dimension_numbers<[1], [0], [0], [1], [0, 0, 1, 1], [], []>} : vector<8x64xf32>, vector<64x128xf32>, vector<8x128xf32> -> vector<8x128xf32>
      %c0_17 = arith.constant 0 : index
      %c0_18 = arith.constant 0 : index
      %80 = vector.load %arg5[%c0_17, %c0_18] : memref<1x128xf32, #tpu.memory_space<vmem>>, vector<1x128xf32>
      %81 = vector.broadcast %80 : vector<1x128xf32> to vector<8x128xf32>
      %82 = arith.addf %79, %81 : vector<8x128xf32>
      %c0_19 = arith.constant 0 : index
      %c0_20 = arith.constant 0 : index
      %83 = vector.load %arg6[%c0_19, %c0_20] : memref<8x128xf32, #tpu.memory_space<vmem>>, vector<8x128xf32>
      tpu.vector_store %arg6[%c0_19, %c0_20], %82 {strides = array<i32>} : memref<8x128xf32, #tpu.memory_space<vmem>>, vector<8x128xf32>,
    } else {
    }
    return
  }
  func.func @transform_0(%arg0: i32, %arg1: i32) -> (i32, i32) {
    %c0_i32 = arith.constant 0 : i32
    %c0_i32_0 = arith.constant 0 : i32
    return %arg0, %c0_i32 : i32, i32
  }
  func.func @transform_1(%arg0: i32, %arg1: i32) -> (i32, i32) {
    %c0_i32 = arith.constant 0 : i32
    %c0_i32_0 = arith.constant 0 : i32
    return %arg1, %c0_i32 : i32, i32
  }
  func.func @transform_2(%arg0: i32, %arg1: i32) -> (i32, i32) {
    %c0_i32 = arith.constant 0 : i32
    %c0_i32_0 = arith.constant 0 : i32
    %c0_i32_1 = arith.constant 0 : i32
    return %c0_i32, %c0_i32_0 : i32, i32
  }
  func.func @transform_3(%arg0: i32, %arg1: i32) -> (i32, i32) {
    %c0_i32 = arith.constant 0 : i32
    %c0_i32_0 = arith.constant 0 : i32
    %c0_i32_1 = arith.constant 0 : i32
    return %c0_i32, %c0_i32_0 : i32, i32
  }
  func.func @transform_4(%arg0: i32, %arg1: i32) -> (i32, i32) {
    %c0_i32 = arith.constant 0 : i32
    %c0_i32_0 = arith.constant 0 : i32
    return %arg0, %c0_i32 : i32, i32
  }
}

</mosaic_0001>

<llo_original>
// kernel: tpu_custom_call.1
$region0: #{tpu_custom_call.1}
  #allocation0 [shape = 'u32[]', space=smem, size = 0x4, offset = 0x4, fixed_abs, tag = 'smem constant byte address 0x4 - core index']
  #allocation1 [shape = 'u32[144,128]{1,0:T(1,128)}', space=vmem, size = 0x12000, scoped, tag = 'internal scratch']
  #allocation2 [shape = 'f32[8,64]{1,0:T(8,128)}', space=vmem, size = 0x1000, scoped, tag = 'scratch operand']
  %s0 = inlined_call_operand.vmem [shape: s32[16,8], index: 0, kind: input, shape index: {}]
  %s1 = inlined_call_operand.vmem [shape: bf16[2048,64], index: 1, kind: input, shape index: {}]
  %s2 = inlined_call_operand.vmem [shape: f32[64,128], index: 2, kind: input, shape index: {}]
  %s3 = inlined_call_operand.vmem [shape: f32[1,128], index: 3, kind: input, shape index: {}]
  %s4 = inlined_call_operand.hbm [shape: f32[16,128], index: 4, kind: output, shape index: {}]
  %s5 = sld [smem:[#allocation0]]
  $region57: #{tpu_custom_call.1} parent=0
    _
  %s7 = ssub.s32 1, %s5
  %s8 = scalar_select 0, %s7, %s5
  $region1: #{tpu_custom_call.1} parent=0
    #allocation3 [shape = 'u8[8192]{0}', space=vmem, size = 0x2000, scoped, tag = 'output window, operand 0']
    #allocation4 [shape = 's32[2]{0}', space=sflag, size = 0x8, scoped, tag = 'scoped memory for tpu_custom_call.1']
    %9 = vsyncpa [#allocation4], 0
    %s10 = scalar_lea.sflag [#allocation4], 1
    %11 = vsyncpa %s10, 0
    loop: start=0, step=1, limit=6
    $region2: #{tpu_custom_call.1} parent=1 // loop_pre_header
      _
    $region3: #{tpu_custom_call.1} parent=1 // loop_header
      %s13 = sphi 0, %s17
      %p14 = scmp.ge.s32.totalorder %s13, 6
      %s20 = sphi 0, %s32
      %s21 = sphi 0, %s28
      %s22 = sphi 0, %s20
      %s23 = sphi 0, %s21
      %s24 = sphi 0, %s22
      %s25 = sphi 0, %s23
      %s35 = sphi 0, %s37
      %s38 = sphi 0, %s35
      %s39 = sphi 0, %s38
      %s55 = sphi 0, %s39
      %s61 = sphi 0, %s63
      %s64 = sphi 0, %s61
      %s65 = sphi 0, %s64
      %s81 = sphi 0, %s65
      %s85 = sphi 0, %s85
      %s87 = sphi 0, %s85
      %s88 = sphi 0, %s87
      %s102 = sphi 0, %s88
      %s106 = sphi 0, %s106
      %s108 = sphi 0, %s106
      %s109 = sphi 0, %s108
      %s123 = sphi 0, %s109
      %s129 = sphi 0, %s131
      %s132 = sphi 0, %s129
      %s133 = sphi 0, %s132
      %s149 = sphi 0, %s133
    $region4: #{tpu_custom_call.1} parent=1 // loop_header_branch
      %16 = sbr.rel (%p14) target = $region8
    $region5: #{tpu_custom_call.1} parent=1 // loop_body
      %s18 = ssub.s32 %s13, 1
      %s19 = ssub.s32 %s13, 2
      %s26 = sadd.s32 1, %s21
      %p27 = scmp.ge.s32.totalorder %s26, 2
      %s28 = scalar_select %p27, 0, %s26
      %s29 = sadd.s32 1, %s20
      %s30 = scalar_select %p27, %s29, %s20
      %p31 = scmp.ge.s32.totalorder %s30, 2
      %s32 = scalar_select %p31, 0, %s30
      %s33 = ssub.s32 %s20, %s32
      %p34 = scmp.eq.s32.totalorder %s33, 0
      %s36 = sadd.s32 %s35, 1
      %s37 = scalar_select %p34, %s35, %s36
      %p40 = pneg %p34
      %p41 = scmp.eq.s32.totalorder %s13, 3
      %p42 = por %p40, %p41
      %p43 = scmp.ne.s32.totalorder %s35, %s38
      %p44 = scmp.eq.s32.totalorder %s13, 0
      %p45 = por %p43, %p44
      %p46 = scmp.ne.s32.totalorder %s35, %s38
      %p47 = scmp.eq.s32.totalorder %s18, 3
      %p48 = por %p46, %p47
      %p49 = scmp.ne.s32.totalorder %s38, %s39
      %p50 = scmp.eq.s32.totalorder %s18, 0
      %p51 = por %p49, %p50
      %p52 = scmp.ne.s32.totalorder %s38, %s39
      %p53 = scmp.eq.s32.totalorder %s19, 3
      %p54 = por %p52, %p53
      %p56 = scmp.ne.s32.totalorder %s39, %s55
      %p57 = scmp.eq.s32.totalorder %s19, 0
      %p58 = por %p56, %p57
      %s59 = ssub.s32 %s21, %s28
      %p60 = scmp.eq.s32.totalorder %s59, 0
      %s62 = sadd.s32 %s61, 1
      %s63 = scalar_select %p60, %s61, %s62
      %p66 = pneg %p60
      %p67 = scmp.eq.s32.totalorder %s13, 3
      %p68 = por %p66, %p67
      %p69 = scmp.ne.s32.totalorder %s61, %s64
      %p70 = scmp.eq.s32.totalorder %s13, 0
      %p71 = por %p69, %p70
      %p72 = scmp.ne.s32.totalorder %s61, %s64
      %p73 = scmp.eq.s32.totalorder %s18, 3
      %p74 = por %p72, %p73
      %p75 = scmp.ne.s32.totalorder %s64, %s65
      %p76 = scmp.eq.s32.totalorder %s18, 0
      %p77 = por %p75, %p76
      %p78 = scmp.ne.s32.totalorder %s64, %s65
      %p79 = scmp.eq.s32.totalorder %s19, 3
      %p80 = por %p78, %p79
      %p82 = scmp.ne.s32.totalorder %s65, %s81
      %p83 = scmp.eq.s32.totalorder %s19, 0
      %p84 = por %p82, %p83
      %s86 = sadd.s32 %s85, 1
      %p89 = scmp.eq.s32.totalorder %s13, 3
      %p90 = scmp.ne.s32.totalorder %s85, %s87
      %p91 = scmp.eq.s32.totalorder %s13, 0
      %p92 = por %p90, %p91
      %p93 = scmp.ne.s32.totalorder %s85, %s87
      %p94 = scmp.eq.s32.totalorder %s18, 3
      %p95 = por %p93, %p94
      %p96 = scmp.ne.s32.totalorder %s87, %s88
      %p97 = scmp.eq.s32.totalorder %s18, 0
      %p98 = por %p96, %p97
      %p99 = scmp.ne.s32.totalorder %s87, %s88
      %p100 = scmp.eq.s32.totalorder %s19, 3
      %p101 = por %p99, %p100
      %p103 = scmp.ne.s32.totalorder %s88, %s102
      %p104 = scmp.eq.s32.totalorder %s19, 0
      %p105 = por %p103, %p104
      %s107 = sadd.s32 %s106, 1
      %p110 = scmp.eq.s32.totalorder %s13, 3
      %p111 = scmp.ne.s32.totalorder %s106, %s108
      %p112 = scmp.eq.s32.totalorder %s13, 0
      %p113 = por %p111, %p112
      %p114 = scmp.ne.s32.totalorder %s106, %s108
      %p115 = scmp.eq.s32.totalorder %s18, 3
      %p116 = por %p114, %p115
      %p117 = scmp.ne.s32.totalorder %s108, %s109
      %p118 = scmp.eq.s32.totalorder %s18, 0
      %p119 = por %p117, %p118
      %p120 = scmp.ne.s32.totalorder %s108, %s109
      %p121 = scmp.eq.s32.totalorder %s19, 3
      %p122 = por %p120, %p121
      %p124 = scmp.ne.s32.totalorder %s109, %s123
      %p125 = scmp.eq.s32.totalorder %s19, 0
      %p126 = por %p124, %p125
      %s127 = ssub.s32 %s20, %s32
      %p128 = scmp.eq.s32.totalorder %s127, 0
      %s130 = sadd.s32 %s129, 1
      %s131 = scalar_select %p128, %s129, %s130
      %p134 = pneg %p128
      %p135 = scmp.eq.s32.totalorder %s13, 3
      %p136 = por %p134, %p135
      %p137 = scmp.ne.s32.totalorder %s129, %s132
      %p138 = scmp.eq.s32.totalorder %s13, 0
      %p139 = por %p137, %p138
      %p140 = scmp.ne.s32.totalorder %s129, %s132
      %p141 = scmp.eq.s32.totalorder %s18, 3
      %p142 = por %p140, %p141
      %p143 = scmp.ne.s32.totalorder %s132, %s133
      %p144 = scmp.eq.s32.totalorder %s18, 0
      %p145 = por %p143, %p144
      %p146 = scmp.ne.s32.totalorder %s132, %s133
      %p147 = scmp.eq.s32.totalorder %s19, 3
      %p148 = por %p146, %p147
      %p150 = scmp.ne.s32.totalorder %s133, %s149
      %p151 = scmp.eq.s32.totalorder %s19, 0
      %p152 = por %p150, %p151
      %p153 = scmp.le.s32.totalorder 1, %s13
      %p154 = scmp.lt.s32.totalorder %s13, 5
      %p155 = pnand %p153, %p154
      %p156 = pneg %p155
      // Predicated region
      $region9: #{tpu_custom_call.1} parent=5 // pred_check
        _
      $region10: #{tpu_custom_call.1} parent=5 // pred_check_branch
        %158 = sbr.rel (%p155) target = $region12
      $region11: #{tpu_custom_call.1} parent=5 // pred_region
        %s159 = ssub.s32 %s13, 1
        // Predicated region
        $region13: #{tpu_custom_call.1} parent=11 // pred_check
          %p160 = pneg %p98
        $region14: #{tpu_custom_call.1} parent=11 // pred_check_branch
          %162 = sbr.rel (%p160) target = $region16
        $region15: #{tpu_custom_call.1} parent=11 // pred_region
          _
        $region16: #{tpu_custom_call.1} parent=11 // pred_fallthru
          _
        // Predicated region
        $region17: #{tpu_custom_call.1} parent=11 // pred_check
          %p163 = pneg %p119
        $region18: #{tpu_custom_call.1} parent=11 // pred_check_branch
          %165 = sbr.rel (%p163) target = $region20
        $region19: #{tpu_custom_call.1} parent=11 // pred_region
          _
        $region20: #{tpu_custom_call.1} parent=11 // pred_fallthru
          _
      $region12: #{tpu_custom_call.1} parent=5 // pred_fallthru
        _
      %p166 = scmp.lt.s32.totalorder %s13, 4
      // Predicated region
      $region21: #{tpu_custom_call.1} parent=5 // pred_check
        %p167 = pneg %p166
      $region22: #{tpu_custom_call.1} parent=5 // pred_check_branch
        %169 = sbr.rel (%p167) target = $region24
      $region23: #{tpu_custom_call.1} parent=5 // pred_region
        // Predicated region
        $region25: #{tpu_custom_call.1} parent=23 // pred_check
          %p170 = pneg %p45
        $region26: #{tpu_custom_call.1} parent=23 // pred_check_branch
          %172 = sbr.rel (%p170) target = $region28
        $region27: #{tpu_custom_call.1} parent=23 // pred_region
          %p173 = scmp.lt.s32.totalorder %s20, 1
          %s174 = scalar_select %p173, %s20, 1
          %s175 = smul.addr %s174, 8
          %s176 = scalar_lea.vmem %s0, %s175
        $region28: #{tpu_custom_call.1} parent=23 // pred_fallthru
          _
        // Predicated region
        $region29: #{tpu_custom_call.1} parent=23 // pred_check
          %p177 = pneg %p71
        $region30: #{tpu_custom_call.1} parent=23 // pred_check_branch
          %179 = sbr.rel (%p177) target = $region32
        $region31: #{tpu_custom_call.1} parent=23 // pred_region
          %s180 = smul.u32 128, %s21
          %p181 = scmp.lt.s32.totalorder %s180, 255
          %s182 = scalar_select %p181, %s180, 255
          %s183 = smul.addr %s182, 4
          %s184 = scalar_lea.vmem %s1, %s183
          %s185 = smul.u32 128, %s21
        $region32: #{tpu_custom_call.1} parent=23 // pred_fallthru
          _
      $region24: #{tpu_custom_call.1} parent=5 // pred_fallthru
        _
      %p186 = scmp.le.s32.totalorder 1, %s13
      %p187 = scmp.lt.s32.totalorder %s13, 5
      %p188 = pnand %p186, %p187
      %p189 = pneg %p188
      // Predicated region
      $region33: #{tpu_custom_call.1} parent=5 // pred_check
        _
      $region34: #{tpu_custom_call.1} parent=5 // pred_check_branch
        %191 = sbr.rel (%p188) target = $region36
      $region35: #{tpu_custom_call.1} parent=5 // pred_region
        %s192 = ssub.s32 %s13, 1
        %p193 = scmp.lt.s32.totalorder %s22, 1
        %s194 = scalar_select %p193, %s22, 1
        %s195 = smul.addr %s194, 8
        %s196 = scalar_lea.vmem %s0, %s195
        %p197 = pneg %p51
        %p198 = pneg %p48
        %s199 = smul.u32 128, %s23
        %p200 = scmp.lt.s32.totalorder %s199, 255
        %s201 = scalar_select %p200, %s199, 255
        %s202 = smul.addr %s201, 4
        %s203 = scalar_lea.vmem %s1, %s202
        %p204 = pneg %p77
        %p205 = pneg %p74
        %p206 = pneg %p98
        %p207 = pneg %p95
        %p208 = pneg %p119
        %p209 = pneg %p116
        %p210 = pneg %p145
        %p211 = pneg %p142
        %s212 = sand.u32 %s132, 1
        %s213 = scalar_lea.sflag [#allocation4], %s212
        %s214 = sand.u32 %s132, 1
        %s215 = smul.addr %s214, 8
        %s216 = scalar_lea.vmem [#allocation3], %s215
        %p217 = scmp.lt.s32.totalorder %s22, 1
        %s218 = scalar_select %p217, %s22, 1
        %s219 = smul.addr %s218, 8
        %s220 = scalar_lea.vmem %s0, %s219
        %s221 = smul.u32 128, %s23
        %p222 = scmp.lt.s32.totalorder %s221, 255
        %s223 = scalar_select %p222, %s221, 255
        %s224 = smul.addr %s223, 4
        %s225 = scalar_lea.vmem %s1, %s224
        %s226 = smul.u32 128, %s23
        %p228 = scmp.eq.s32.totalorder %s23, 0
        // Predicated region
        $region37: #{tpu_custom_call.1} parent=35 // pred_check
          %p229 = pneg %p228
        $region38: #{tpu_custom_call.1} parent=35 // pred_check_branch
          %231 = sbr.rel (%p229) target = $region40
        $region39: #{tpu_custom_call.1} parent=35 // pred_region
          %vm232 = vcmask 523264
          %233 = vst.msk [vmem:[#allocation2] sm:$0xff] %vm232, 0.0
        $region40: #{tpu_custom_call.1} parent=35 // pred_fallthru
          _
        %v234 = vld [vmem:[%s220] sm:$0xff]
        %s235 = smul.u32 %s23, 1024
        %v236 = vstv %s235
        %v237 = vsub.s32 %v234, %v236
        %v238 = vlaneseq
        %v239 = vand.u32 %v238, 127
        %v240 = vadd.s32 %v239, 128
        %v241 = vadd.s32 %v239, 256
        %v242 = vadd.s32 %v239, 384
        %v243 = vadd.s32 %v239, 512
        %v244 = vadd.s32 %v239, 640
        %v245 = vadd.s32 %v239, 768
        %v246 = vadd.s32 %v239, 896
        %247 = vset.pattern.permute.xlu0 0
        %248 = vperm.xlu0 %247, %v237
        %v249 = vpop.permute.xlu0 %248
        %vm250 = vcmp.eq.s32.totalorder %v249, %v239
        %vm251 = vcmp.eq.s32.totalorder %v249, %v240
        %vm252 = vcmp.eq.s32.totalorder %v249, %v241
        %vm253 = vcmp.eq.s32.totalorder %v249, %v242
        %vm254 = vcmp.eq.s32.totalorder %v249, %v243
        %vm255 = vcmp.eq.s32.totalorder %v249, %v244
        %vm256 = vcmp.eq.s32.totalorder %v249, %v245
        %vm257 = vcmp.eq.s32.totalorder %v249, %v246
        %v258 = vsel %vm250, 1, 0
        %v259 = vsel %vm251, 1, 0
        %v260 = vsel %vm252, 1, 0
        %v261 = vsel %vm253, 1, 0
        %v262 = vsel %vm254, 1, 0
        %v263 = vsel %vm255, 1, 0
        %v264 = vsel %vm256, 1, 0
        %v265 = vsel %vm257, 1, 0
        %v266 = vcvt.s32.f32 %v258
        %v267 = vcvt.s32.f32 %v259
        %v268 = vcvt.s32.f32 %v260
        %v269 = vcvt.s32.f32 %v261
        %v270 = vcvt.s32.f32 %v262
        %v271 = vcvt.s32.f32 %v263
        %v272 = vcvt.s32.f32 %v264
        %v273 = vcvt.s32.f32 %v265
        %v274 = vpack.c.bf16 %v266, %v266
        %v275 = vpack.c.bf16 %v267, %v267
        %v276 = vpack.c.bf16 %v268, %v268
        %v277 = vpack.c.bf16 %v269, %v269
        %v278 = vpack.c.bf16 %v270, %v270
        %v279 = vpack.c.bf16 %v271, %v271
        %v280 = vpack.c.bf16 %v272, %v272
        %v281 = vpack.c.bf16 %v273, %v273
        %v282 = vadd.bf16 %v274, 0
        %v283 = vadd.bf16 %v275, 0
        %v284 = vadd.bf16 %v276, 0
        %v285 = vadd.bf16 %v277, 0
        %v286 = vadd.bf16 %v278, 0
        %v287 = vadd.bf16 %v279, 0
        %v288 = vadd.bf16 %v280, 0
        %v289 = vadd.bf16 %v281, 0
        %290 = vset.pattern.permute.xlu0 1
        %291 = vperm.xlu0 %290, %v237
        %v292 = vpop.permute.xlu0 %291
        %vm293 = vcmp.eq.s32.totalorder %v292, %v239
        %vm294 = vcmp.eq.s32.totalorder %v292, %v240
        %vm295 = vcmp.eq.s32.totalorder %v292, %v241
        %vm296 = vcmp.eq.s32.totalorder %v292, %v242
        %vm297 = vcmp.eq.s32.totalorder %v292, %v243
        %vm298 = vcmp.eq.s32.totalorder %v292, %v244
        %vm299 = vcmp.eq.s32.totalorder %v292, %v245
        %vm300 = vcmp.eq.s32.totalorder %v292, %v246
        %v301 = vsel %vm293, 1, 0
        %v302 = vsel %vm294, 1, 0
        %v303 = vsel %vm295, 1, 0
        %v304 = vsel %vm296, 1, 0
        %v305 = vsel %vm297, 1, 0
        %v306 = vsel %vm298, 1, 0
        %v307 = vsel %vm299, 1, 0
        %v308 = vsel %vm300, 1, 0
        %v309 = vcvt.s32.f32 %v301
        %v310 = vcvt.s32.f32 %v302
        %v311 = vcvt.s32.f32 %v303
        %v312 = vcvt.s32.f32 %v304
        %v313 = vcvt.s32.f32 %v305
        %v314 = vcvt.s32.f32 %v306
        %v315 = vcvt.s32.f32 %v307
        %v316 = vcvt.s32.f32 %v308
        %v317 = vpack.c.bf16 %v309, %v309
        %v318 = vpack.c.bf16 %v310, %v310
        %v319 = vpack.c.bf16 %v311, %v311
        %v320 = vpack.c.bf16 %v312, %v312
        %v321 = vpack.c.bf16 %v313, %v313
        %v322 = vpack.c.bf16 %v314, %v314
        %v323 = vpack.c.bf16 %v315, %v315
        %v324 = vpack.c.bf16 %v316, %v316
        %v325 = vadd.bf16 %v282, %v317
        %v326 = vadd.bf16 %v283, %v318
        %v327 = vadd.bf16 %v284, %v319
        %v328 = vadd.bf16 %v285, %v320
        %v329 = vadd.bf16 %v286, %v321
        %v330 = vadd.bf16 %v287, %v322
        %v331 = vadd.bf16 %v288, %v323
        %v332 = vadd.bf16 %v289, %v324
        %333 = vset.pattern.permute.xlu0 2
        %334 = vperm.xlu0 %333, %v237
        %v335 = vpop.permute.xlu0 %334
        %vm336 = vcmp.eq.s32.totalorder %v335, %v239
        %vm337 = vcmp.eq.s32.totalorder %v335, %v240
        %vm338 = vcmp.eq.s32.totalorder %v335, %v241
        %vm339 = vcmp.eq.s32.totalorder %v335, %v242
        %vm340 = vcmp.eq.s32.totalorder %v335, %v243
        %vm341 = vcmp.eq.s32.totalorder %v335, %v244
        %vm342 = vcmp.eq.s32.totalorder %v335, %v245
        %vm343 = vcmp.eq.s32.totalorder %v335, %v246
        %v344 = vsel %vm336, 1, 0
        %v345 = vsel %vm337, 1, 0
        %v346 = vsel %vm338, 1, 0
        %v347 = vsel %vm339, 1, 0
        %v348 = vsel %vm340, 1, 0
        %v349 = vsel %vm341, 1, 0
        %v350 = vsel %vm342, 1, 0
        %v351 = vsel %vm343, 1, 0
        %v352 = vcvt.s32.f32 %v344
        %v353 = vcvt.s32.f32 %v345
        %v354 = vcvt.s32.f32 %v346
        %v355 = vcvt.s32.f32 %v347
        %v356 = vcvt.s32.f32 %v348
        %v357 = vcvt.s32.f32 %v349
        %v358 = vcvt.s32.f32 %v350
        %v359 = vcvt.s32.f32 %v351
        %v360 = vpack.c.bf16 %v352, %v352
        %v361 = vpack.c.bf16 %v353, %v353
        %v362 = vpack.c.bf16 %v354, %v354
        %v363 = vpack.c.bf16 %v355, %v355
        %v364 = vpack.c.bf16 %v356, %v356
        %v365 = vpack.c.bf16 %v357, %v357
        %v366 = vpack.c.bf16 %v358, %v358
        %v367 = vpack.c.bf16 %v359, %v359
        %v368 = vadd.bf16 %v325, %v360
        %v369 = vadd.bf16 %v326, %v361
        %v370 = vadd.bf16 %v327, %v362
        %v371 = vadd.bf16 %v328, %v363
        %v372 = vadd.bf16 %v329, %v364
        %v373 = vadd.bf16 %v330, %v365
        %v374 = vadd.bf16 %v331, %v366
        %v375 = vadd.bf16 %v332, %v367
        %376 = vset.pattern.permute.xlu0 3
        %377 = vperm.xlu0 %376, %v237
        %v378 = vpop.permute.xlu0 %377
        %vm379 = vcmp.eq.s32.totalorder %v378, %v239
        %vm380 = vcmp.eq.s32.totalorder %v378, %v240
        %vm381 = vcmp.eq.s32.totalorder %v378, %v241
        %vm382 = vcmp.eq.s32.totalorder %v378, %v242
        %vm383 = vcmp.eq.s32.totalorder %v378, %v243
        %vm384 = vcmp.eq.s32.totalorder %v378, %v244
        %vm385 = vcmp.eq.s32.totalorder %v378, %v245
        %vm386 = vcmp.eq.s32.totalorder %v378, %v246
        %v387 = vsel %vm379, 1, 0
        %v388 = vsel %vm380, 1, 0
        %v389 = vsel %vm381, 1, 0
        %v390 = vsel %vm382, 1, 0
        %v391 = vsel %vm383, 1, 0
        %v392 = vsel %vm384, 1, 0
        %v393 = vsel %vm385, 1, 0
        %v394 = vsel %vm386, 1, 0
        %v395 = vcvt.s32.f32 %v387
        %v396 = vcvt.s32.f32 %v388
        %v397 = vcvt.s32.f32 %v389
        %v398 = vcvt.s32.f32 %v390
        %v399 = vcvt.s32.f32 %v391
        %v400 = vcvt.s32.f32 %v392
        %v401 = vcvt.s32.f32 %v393
        %v402 = vcvt.s32.f32 %v394
        %v403 = vpack.c.bf16 %v395, %v395
        %v404 = vpack.c.bf16 %v396, %v396
        %v405 = vpack.c.bf16 %v397, %v397
        %v406 = vpack.c.bf16 %v398, %v398
        %v407 = vpack.c.bf16 %v399, %v399
        %v408 = vpack.c.bf16 %v400, %v400
        %v409 = vpack.c.bf16 %v401, %v401
        %v410 = vpack.c.bf16 %v402, %v402
        %v411 = vadd.bf16 %v368, %v403
        %v412 = vadd.bf16 %v369, %v404
        %v413 = vadd.bf16 %v370, %v405
        %v414 = vadd.bf16 %v371, %v406
        %v415 = vadd.bf16 %v372, %v407
        %v416 = vadd.bf16 %v373, %v408
        %v417 = vadd.bf16 %v374, %v409
        %v418 = vadd.bf16 %v375, %v410
        %419 = vset.pattern.permute.xlu0 4
        %420 = vperm.xlu0 %419, %v237
        %v421 = vpop.permute.xlu0 %420
        %vm422 = vcmp.eq.s32.totalorder %v421, %v239
        %vm423 = vcmp.eq.s32.totalorder %v421, %v240
        %vm424 = vcmp.eq.s32.totalorder %v421, %v241
        %vm425 = vcmp.eq.s32.totalorder %v421, %v242
        %vm426 = vcmp.eq.s32.totalorder %v421, %v243
        %vm427 = vcmp.eq.s32.totalorder %v421, %v244
        %vm428 = vcmp.eq.s32.totalorder %v421, %v245
        %vm429 = vcmp.eq.s32.totalorder %v421, %v246
        %v430 = vsel %vm422, 1, 0
        %v431 = vsel %vm423, 1, 0
        %v432 = vsel %vm424, 1, 0
        %v433 = vsel %vm425, 1, 0
        %v434 = vsel %vm426, 1, 0
        %v435 = vsel %vm427, 1, 0
        %v436 = vsel %vm428, 1, 0
        %v437 = vsel %vm429, 1, 0
        %v438 = vcvt.s32.f32 %v430
        %v439 = vcvt.s32.f32 %v431
        %v440 = vcvt.s32.f32 %v432
        %v441 = vcvt.s32.f32 %v433
        %v442 = vcvt.s32.f32 %v434
        %v443 = vcvt.s32.f32 %v435
        %v444 = vcvt.s32.f32 %v436
        %v445 = vcvt.s32.f32 %v437
        %v446 = vpack.c.bf16 %v438, %v438
        %v447 = vpack.c.bf16 %v439, %v439
        %v448 = vpack.c.bf16 %v440, %v440
        %v449 = vpack.c.bf16 %v441, %v441
        %v450 = vpack.c.bf16 %v442, %v442
        %v451 = vpack.c.bf16 %v443, %v443
        %v452 = vpack.c.bf16 %v444, %v444
        %v453 = vpack.c.bf16 %v445, %v445
        %v454 = vadd.bf16 %v411, %v446
        %v455 = vadd.bf16 %v412, %v447
        %v456 = vadd.bf16 %v413, %v448
        %v457 = vadd.bf16 %v414, %v449
        %v458 = vadd.bf16 %v415, %v450
        %v459 = vadd.bf16 %v416, %v451
        %v460 = vadd.bf16 %v417, %v452
        %v461 = vadd.bf16 %v418, %v453
        %462 = vset.pattern.permute.xlu0 5
        %463 = vperm.xlu0 %462, %v237
        %v464 = vpop.permute.xlu0 %463
        %vm465 = vcmp.eq.s32.totalorder %v464, %v239
        %vm466 = vcmp.eq.s32.totalorder %v464, %v240
        %vm467 = vcmp.eq.s32.totalorder %v464, %v241
        %vm468 = vcmp.eq.s32.totalorder %v464, %v242
        %vm469 = vcmp.eq.s32.totalorder %v464, %v243
        %vm470 = vcmp.eq.s32.totalorder %v464, %v244
        %vm471 = vcmp.eq.s32.totalorder %v464, %v245
        %vm472 = vcmp.eq.s32.totalorder %v464, %v246
        %v473 = vsel %vm465, 1, 0
        %v474 = vsel %vm466, 1, 0
        %v475 = vsel %vm467, 1, 0
        %v476 = vsel %vm468, 1, 0
        %v477 = vsel %vm469, 1, 0
        %v478 = vsel %vm470, 1, 0
        %v479 = vsel %vm471, 1, 0
        %v480 = vsel %vm472, 1, 0
        %v481 = vcvt.s32.f32 %v473
        %v482 = vcvt.s32.f32 %v474
        %v483 = vcvt.s32.f32 %v475
        %v484 = vcvt.s32.f32 %v476
        %v485 = vcvt.s32.f32 %v477
        %v486 = vcvt.s32.f32 %v478
        %v487 = vcvt.s32.f32 %v479
        %v488 = vcvt.s32.f32 %v480
        %v489 = vpack.c.bf16 %v481, %v481
        %v490 = vpack.c.bf16 %v482, %v482
        %v491 = vpack.c.bf16 %v483, %v483
        %v492 = vpack.c.bf16 %v484, %v484
        %v493 = vpack.c.bf16 %v485, %v485
        %v494 = vpack.c.bf16 %v486, %v486
        %v495 = vpack.c.bf16 %v487, %v487
        %v496 = vpack.c.bf16 %v488, %v488
        %v497 = vadd.bf16 %v454, %v489
        %v498 = vadd.bf16 %v455, %v490
        %v499 = vadd.bf16 %v456, %v491
        %v500 = vadd.bf16 %v457, %v492
        %v501 = vadd.bf16 %v458, %v493
        %v502 = vadd.bf16 %v459, %v494
        %v503 = vadd.bf16 %v460, %v495
        %v504 = vadd.bf16 %v461, %v496
        %505 = vset.pattern.permute.xlu0 6
        %506 = vperm.xlu0 %505, %v237
        %v507 = vpop.permute.xlu0 %506
        %vm508 = vcmp.eq.s32.totalorder %v507, %v239
        %vm509 = vcmp.eq.s32.totalorder %v507, %v240
        %vm510 = vcmp.eq.s32.totalorder %v507, %v241
        %vm511 = vcmp.eq.s32.totalorder %v507, %v242
        %vm512 = vcmp.eq.s32.totalorder %v507, %v243
        %vm513 = vcmp.eq.s32.totalorder %v507, %v244
        %vm514 = vcmp.eq.s32.totalorder %v507, %v245
        %vm515 = vcmp.eq.s32.totalorder %v507, %v246
        %v516 = vsel %vm508, 1, 0
        %v517 = vsel %vm509, 1, 0
        %v518 = vsel %vm510, 1, 0
        %v519 = vsel %vm511, 1, 0
        %v520 = vsel %vm512, 1, 0
        %v521 = vsel %vm513, 1, 0
        %v522 = vsel %vm514, 1, 0
        %v523 = vsel %vm515, 1, 0
        %v524 = vcvt.s32.f32 %v516
        %v525 = vcvt.s32.f32 %v517
        %v526 = vcvt.s32.f32 %v518
        %v527 = vcvt.s32.f32 %v519
        %v528 = vcvt.s32.f32 %v520
        %v529 = vcvt.s32.f32 %v521
        %v530 = vcvt.s32.f32 %v522
        %v531 = vcvt.s32.f32 %v523
        %v532 = vpack.c.bf16 %v524, %v524
        %v533 = vpack.c.bf16 %v525, %v525
        %v534 = vpack.c.bf16 %v526, %v526
        %v535 = vpack.c.bf16 %v527, %v527
        %v536 = vpack.c.bf16 %v528, %v528
        %v537 = vpack.c.bf16 %v529, %v529
        %v538 = vpack.c.bf16 %v530, %v530
        %v539 = vpack.c.bf16 %v531, %v531
        %v540 = vadd.bf16 %v497, %v532
        %v541 = vadd.bf16 %v498, %v533
        %v542 = vadd.bf16 %v499, %v534
        %v543 = vadd.bf16 %v500, %v535
        %v544 = vadd.bf16 %v501, %v536
        %v545 = vadd.bf16 %v502, %v537
        %v546 = vadd.bf16 %v503, %v538
        %v547 = vadd.bf16 %v504, %v539
        %548 = vset.pattern.permute.xlu0 7
        %549 = vperm.xlu0 %548, %v237
        %v550 = vpop.permute.xlu0 %549
        %vm551 = vcmp.eq.s32.totalorder %v550, %v239
        %vm552 = vcmp.eq.s32.totalorder %v550, %v240
        %vm553 = vcmp.eq.s32.totalorder %v550, %v241
        %vm554 = vcmp.eq.s32.totalorder %v550, %v242
        %vm555 = vcmp.eq.s32.totalorder %v550, %v243
        %vm556 = vcmp.eq.s32.totalorder %v550, %v244
        %vm557 = vcmp.eq.s32.totalorder %v550, %v245
        %vm558 = vcmp.eq.s32.totalorder %v550, %v246
        %v559 = vsel %vm551, 1, 0
        %v560 = vsel %vm552, 1, 0
        %v561 = vsel %vm553, 1, 0
        %v562 = vsel %vm554, 1, 0
        %v563 = vsel %vm555, 1, 0
        %v564 = vsel %vm556, 1, 0
        %v565 = vsel %vm557, 1, 0
        %v566 = vsel %vm558, 1, 0
        %v567 = vcvt.s32.f32 %v559
        %v568 = vcvt.s32.f32 %v560
        %v569 = vcvt.s32.f32 %v561
        %v570 = vcvt.s32.f32 %v562
        %v571 = vcvt.s32.f32 %v563
        %v572 = vcvt.s32.f32 %v564
        %v573 = vcvt.s32.f32 %v565
        %v574 = vcvt.s32.f32 %v566
        %v575 = vpack.c.bf16 %v567, %v567
        %v576 = vpack.c.bf16 %v568, %v568
        %v577 = vpack.c.bf16 %v569, %v569
        %v578 = vpack.c.bf16 %v570, %v570
        %v579 = vpack.c.bf16 %v571, %v571
        %v580 = vpack.c.bf16 %v572, %v572
        %v581 = vpack.c.bf16 %v573, %v573
        %v582 = vpack.c.bf16 %v574, %v574
        %v583 = vadd.bf16 %v540, %v575
        %v584 = vadd.bf16 %v541, %v576
        %v585 = vadd.bf16 %v542, %v577
        %v586 = vadd.bf16 %v543, %v578
        %v587 = vadd.bf16 %v544, %v579
        %v588 = vadd.bf16 %v545, %v580
        %v589 = vadd.bf16 %v546, %v581
        %v590 = vadd.bf16 %v547, %v582
        %v591 = vld [vmem:[#allocation2] sm:$0xff]
        %v592 = vld [vmem:[%s225] sm:$0xf]
        %v593 = vld [vmem:[%s225 + $0x4] sm:$0xf]
        %v594 = vld [vmem:[%s225 + $0x8] sm:$0xf]
        %v595 = vld [vmem:[%s225 + $0xc] sm:$0xf]
        %v596 = vld [vmem:[%s225 + $0x10] sm:$0xf]
        %v597 = vld [vmem:[%s225 + $0x14] sm:$0xf]
        %v598 = vld [vmem:[%s225 + $0x18] sm:$0xf]
        %v599 = vld [vmem:[%s225 + $0x1c] sm:$0xf]
        %v600 = vld [vmem:[%s225 + $0x20] sm:$0xf]
        %v601 = vld [vmem:[%s225 + $0x24] sm:$0xf]
        %v602 = vld [vmem:[%s225 + $0x28] sm:$0xf]
        %v603 = vld [vmem:[%s225 + $0x2c] sm:$0xf]
        %v604 = vld [vmem:[%s225 + $0x30] sm:$0xf]
        %v605 = vld [vmem:[%s225 + $0x34] sm:$0xf]
        %v606 = vld [vmem:[%s225 + $0x38] sm:$0xf]
        %v607 = vld [vmem:[%s225 + $0x3c] sm:$0xf]
        %v608 = vld [vmem:[%s225 + $0x40] sm:$0xf]
        %v609 = vld [vmem:[%s225 + $0x44] sm:$0xf]
        %v610 = vld [vmem:[%s225 + $0x48] sm:$0xf]
        %v611 = vld [vmem:[%s225 + $0x4c] sm:$0xf]
        %v612 = vld [vmem:[%s225 + $0x50] sm:$0xf]
        %v613 = vld [vmem:[%s225 + $0x54] sm:$0xf]
        %v614 = vld [vmem:[%s225 + $0x58] sm:$0xf]
        %v615 = vld [vmem:[%s225 + $0x5c] sm:$0xf]
        %v616 = vld [vmem:[%s225 + $0x60] sm:$0xf]
        %v617 = vld [vmem:[%s225 + $0x64] sm:$0xf]
        %v618 = vld [vmem:[%s225 + $0x68] sm:$0xf]
        %v619 = vld [vmem:[%s225 + $0x6c] sm:$0xf]
        %v620 = vld [vmem:[%s225 + $0x70] sm:$0xf]
        %v621 = vld [vmem:[%s225 + $0x74] sm:$0xf]
        %v622 = vld [vmem:[%s225 + $0x78] sm:$0xf]
        %v623 = vld [vmem:[%s225 + $0x7c] sm:$0xf]
        %v624 = vld [vmem:[%s225 + $0x80] sm:$0xf]
        %v625 = vld [vmem:[%s225 + $0x84] sm:$0xf]
        %v626 = vld [vmem:[%s225 + $0x88] sm:$0xf]
        %v627 = vld [vmem:[%s225 + $0x8c] sm:$0xf]
        %v628 = vld [vmem:[%s225 + $0x90] sm:$0xf]
        %v629 = vld [vmem:[%s225 + $0x94] sm:$0xf]
        %v630 = vld [vmem:[%s225 + $0x98] sm:$0xf]
        %v631 = vld [vmem:[%s225 + $0x9c] sm:$0xf]
        %v632 = vld [vmem:[%s225 + $0xa0] sm:$0xf]
        %v633 = vld [vmem:[%s225 + $0xa4] sm:$0xf]
        %v634 = vld [vmem:[%s225 + $0xa8] sm:$0xf]
        %v635 = vld [vmem:[%s225 + $0xac] sm:$0xf]
        %v636 = vld [vmem:[%s225 + $0xb0] sm:$0xf]
        %v637 = vld [vmem:[%s225 + $0xb4] sm:$0xf]
        %v638 = vld [vmem:[%s225 + $0xb8] sm:$0xf]
        %v639 = vld [vmem:[%s225 + $0xbc] sm:$0xf]
        %v640 = vld [vmem:[%s225 + $0xc0] sm:$0xf]
        %v641 = vld [vmem:[%s225 + $0xc4] sm:$0xf]
        %v642 = vld [vmem:[%s225 + $0xc8] sm:$0xf]
        %v643 = vld [vmem:[%s225 + $0xcc] sm:$0xf]
        %v644 = vld [vmem:[%s225 + $0xd0] sm:$0xf]
        %v645 = vld [vmem:[%s225 + $0xd4] sm:$0xf]
        %v646 = vld [vmem:[%s225 + $0xd8] sm:$0xf]
        %v647 = vld [vmem:[%s225 + $0xdc] sm:$0xf]
        %v648 = vld [vmem:[%s225 + $0xe0] sm:$0xf]
        %v649 = vld [vmem:[%s225 + $0xe4] sm:$0xf]
        %v650 = vld [vmem:[%s225 + $0xe8] sm:$0xf]
        %v651 = vld [vmem:[%s225 + $0xec] sm:$0xf]
        %v652 = vld [vmem:[%s225 + $0xf0] sm:$0xf]
        %v653 = vld [vmem:[%s225 + $0xf4] sm:$0xf]
        %v654 = vld [vmem:[%s225 + $0xf8] sm:$0xf]
        %v655 = vld [vmem:[%s225 + $0xfc] sm:$0xf]
        %v656 = vld [vmem:[%s225 + $0x100] sm:$0xf]
        %v657 = vld [vmem:[%s225 + $0x104] sm:$0xf]
        %v658 = vld [vmem:[%s225 + $0x108] sm:$0xf]
        %v659 = vld [vmem:[%s225 + $0x10c] sm:$0xf]
        %v660 = vld [vmem:[%s225 + $0x110] sm:$0xf]
        %v661 = vld [vmem:[%s225 + $0x114] sm:$0xf]
        %v662 = vld [vmem:[%s225 + $0x118] sm:$0xf]
        %v663 = vld [vmem:[%s225 + $0x11c] sm:$0xf]
        %v664 = vld [vmem:[%s225 + $0x120] sm:$0xf]
        %v665 = vld [vmem:[%s225 + $0x124] sm:$0xf]
        %v666 = vld [vmem:[%s225 + $0x128] sm:$0xf]
        %v667 = vld [vmem:[%s225 + $0x12c] sm:$0xf]
        %v668 = vld [vmem:[%s225 + $0x130] sm:$0xf]
        %v669 = vld [vmem:[%s225 + $0x134] sm:$0xf]
        %v670 = vld [vmem:[%s225 + $0x138] sm:$0xf]
        %v671 = vld [vmem:[%s225 + $0x13c] sm:$0xf]
        %v672 = vld [vmem:[%s225 + $0x140] sm:$0xf]
        %v673 = vld [vmem:[%s225 + $0x144] sm:$0xf]
        %v674 = vld [vmem:[%s225 + $0x148] sm:$0xf]
        %v675 = vld [vmem:[%s225 + $0x14c] sm:$0xf]
        %v676 = vld [vmem:[%s225 + $0x150] sm:$0xf]
        %v677 = vld [vmem:[%s225 + $0x154] sm:$0xf]
        %v678 = vld [vmem:[%s225 + $0x158] sm:$0xf]
        %v679 = vld [vmem:[%s225 + $0x15c] sm:$0xf]
        %v680 = vld [vmem:[%s225 + $0x160] sm:$0xf]
        %v681 = vld [vmem:[%s225 + $0x164] sm:$0xf]
        %v682 = vld [vmem:[%s225 + $0x168] sm:$0xf]
        %v683 = vld [vmem:[%s225 + $0x16c] sm:$0xf]
        %v684 = vld [vmem:[%s225 + $0x170] sm:$0xf]
        %v685 = vld [vmem:[%s225 + $0x174] sm:$0xf]
        %v686 = vld [vmem:[%s225 + $0x178] sm:$0xf]
        %v687 = vld [vmem:[%s225 + $0x17c] sm:$0xf]
        %v688 = vld [vmem:[%s225 + $0x180] sm:$0xf]
        %v689 = vld [vmem:[%s225 + $0x184] sm:$0xf]
        %v690 = vld [vmem:[%s225 + $0x188] sm:$0xf]
        %v691 = vld [vmem:[%s225 + $0x18c] sm:$0xf]
        %v692 = vld [vmem:[%s225 + $0x190] sm:$0xf]
        %v693 = vld [vmem:[%s225 + $0x194] sm:$0xf]
        %v694 = vld [vmem:[%s225 + $0x198] sm:$0xf]
        %v695 = vld [vmem:[%s225 + $0x19c] sm:$0xf]
        %v696 = vld [vmem:[%s225 + $0x1a0] sm:$0xf]
        %v697 = vld [vmem:[%s225 + $0x1a4] sm:$0xf]
        %v698 = vld [vmem:[%s225 + $0x1a8] sm:$0xf]
        %v699 = vld [vmem:[%s225 + $0x1ac] sm:$0xf]
        %v700 = vld [vmem:[%s225 + $0x1b0] sm:$0xf]
        %v701 = vld [vmem:[%s225 + $0x1b4] sm:$0xf]
        %v702 = vld [vmem:[%s225 + $0x1b8] sm:$0xf]
        %v703 = vld [vmem:[%s225 + $0x1bc] sm:$0xf]
        %v704 = vld [vmem:[%s225 + $0x1c0] sm:$0xf]
        %v705 = vld [vmem:[%s225 + $0x1c4] sm:$0xf]
        %v706 = vld [vmem:[%s225 + $0x1c8] sm:$0xf]
        %v707 = vld [vmem:[%s225 + $0x1cc] sm:$0xf]
        %v708 = vld [vmem:[%s225 + $0x1d0] sm:$0xf]
        %v709 = vld [vmem:[%s225 + $0x1d4] sm:$0xf]
        %v710 = vld [vmem:[%s225 + $0x1d8] sm:$0xf]
        %v711 = vld [vmem:[%s225 + $0x1dc] sm:$0xf]
        %v712 = vld [vmem:[%s225 + $0x1e0] sm:$0xf]
        %v713 = vld [vmem:[%s225 + $0x1e4] sm:$0xf]
        %v714 = vld [vmem:[%s225 + $0x1e8] sm:$0xf]
        %v715 = vld [vmem:[%s225 + $0x1ec] sm:$0xf]
        %v716 = vld [vmem:[%s225 + $0x1f0] sm:$0xf]
        %v717 = vld [vmem:[%s225 + $0x1f4] sm:$0xf]
        %v718 = vld [vmem:[%s225 + $0x1f8] sm:$0xf]
        %v719 = vld [vmem:[%s225 + $0x1fc] sm:$0xf]
        %v848 = vunpack.c.l.b16 %v592
        %v849 = vunpack.c.l.b16 %v593
        %v850 = vunpack.c.l.b16 %v594
        %v851 = vunpack.c.l.b16 %v595
        %v852 = vunpack.c.l.b16 %v596
        %v853 = vunpack.c.l.b16 %v597
        %v854 = vunpack.c.l.b16 %v598
        %v855 = vunpack.c.l.b16 %v599
        %v856 = vunpack.c.l.b16 %v600
        %v857 = vunpack.c.l.b16 %v601
        %v858 = vunpack.c.l.b16 %v602
        %v859 = vunpack.c.l.b16 %v603
        %v860 = vunpack.c.l.b16 %v604
        %v861 = vunpack.c.l.b16 %v605
        %v862 = vunpack.c.l.b16 %v606
        %v863 = vunpack.c.l.b16 %v607
        %v864 = vunpack.c.l.b16 %v608
        %v865 = vunpack.c.l.b16 %v609
        %v866 = vunpack.c.l.b16 %v610
        %v867 = vunpack.c.l.b16 %v611
        %v868 = vunpack.c.l.b16 %v612
        %v869 = vunpack.c.l.b16 %v613
        %v870 = vunpack.c.l.b16 %v614
        %v871 = vunpack.c.l.b16 %v615
        %v872 = vunpack.c.l.b16 %v616
        %v873 = vunpack.c.l.b16 %v617
        %v874 = vunpack.c.l.b16 %v618
        %v875 = vunpack.c.l.b16 %v619
        %v876 = vunpack.c.l.b16 %v620
        %v877 = vunpack.c.l.b16 %v621
        %v878 = vunpack.c.l.b16 %v622
        %v879 = vunpack.c.l.b16 %v623
        %v880 = vunpack.c.l.b16 %v624
        %v881 = vunpack.c.l.b16 %v625
        %v882 = vunpack.c.l.b16 %v626
        %v883 = vunpack.c.l.b16 %v627
        %v884 = vunpack.c.l.b16 %v628
        %v885 = vunpack.c.l.b16 %v629
        %v886 = vunpack.c.l.b16 %v630
        %v887 = vunpack.c.l.b16 %v631
        %v888 = vunpack.c.l.b16 %v632
        %v889 = vunpack.c.l.b16 %v633
        %v890 = vunpack.c.l.b16 %v634
        %v891 = vunpack.c.l.b16 %v635
        %v892 = vunpack.c.l.b16 %v636
        %v893 = vunpack.c.l.b16 %v637
        %v894 = vunpack.c.l.b16 %v638
        %v895 = vunpack.c.l.b16 %v639
        %v896 = vunpack.c.l.b16 %v640
        %v897 = vunpack.c.l.b16 %v641
        %v898 = vunpack.c.l.b16 %v642
        %v899 = vunpack.c.l.b16 %v643
        %v900 = vunpack.c.l.b16 %v644
        %v901 = vunpack.c.l.b16 %v645
        %v902 = vunpack.c.l.b16 %v646
        %v903 = vunpack.c.l.b16 %v647
        %v904 = vunpack.c.l.b16 %v648
        %v905 = vunpack.c.l.b16 %v649
        %v906 = vunpack.c.l.b16 %v650
        %v907 = vunpack.c.l.b16 %v651
        %v908 = vunpack.c.l.b16 %v652
        %v909 = vunpack.c.l.b16 %v653
        %v910 = vunpack.c.l.b16 %v654
        %v911 = vunpack.c.l.b16 %v655
        %v912 = vunpack.c.l.b16 %v656
        %v913 = vunpack.c.l.b16 %v657
        %v914 = vunpack.c.l.b16 %v658
        %v915 = vunpack.c.l.b16 %v659
        %v916 = vunpack.c.l.b16 %v660
        %v917 = vunpack.c.l.b16 %v661
        %v918 = vunpack.c.l.b16 %v662
        %v919 = vunpack.c.l.b16 %v663
        %v920 = vunpack.c.l.b16 %v664
        %v921 = vunpack.c.l.b16 %v665
        %v922 = vunpack.c.l.b16 %v666
        %v923 = vunpack.c.l.b16 %v667
        %v924 = vunpack.c.l.b16 %v668
        %v925 = vunpack.c.l.b16 %v669
        %v926 = vunpack.c.l.b16 %v670
        %v927 = vunpack.c.l.b16 %v671
        %v928 = vunpack.c.l.b16 %v672
        %v929 = vunpack.c.l.b16 %v673
        %v930 = vunpack.c.l.b16 %v674
        %v931 = vunpack.c.l.b16 %v675
        %v932 = vunpack.c.l.b16 %v676
        %v933 = vunpack.c.l.b16 %v677
        %v934 = vunpack.c.l.b16 %v678
        %v935 = vunpack.c.l.b16 %v679
        %v936 = vunpack.c.l.b16 %v680
        %v937 = vunpack.c.l.b16 %v681
        %v938 = vunpack.c.l.b16 %v682
        %v939 = vunpack.c.l.b16 %v683
        %v940 = vunpack.c.l.b16 %v684
        %v941 = vunpack.c.l.b16 %v685
        %v942 = vunpack.c.l.b16 %v686
        %v943 = vunpack.c.l.b16 %v687
        %v944 = vunpack.c.l.b16 %v688
        %v945 = vunpack.c.l.b16 %v689
        %v946 = vunpack.c.l.b16 %v690
        %v947 = vunpack.c.l.b16 %v691
        %v948 = vunpack.c.l.b16 %v692
        %v949 = vunpack.c.l.b16 %v693
        %v950 = vunpack.c.l.b16 %v694
        %v951 = vunpack.c.l.b16 %v695
        %v952 = vunpack.c.l.b16 %v696
        %v953 = vunpack.c.l.b16 %v697
        %v954 = vunpack.c.l.b16 %v698
        %v955 = vunpack.c.l.b16 %v699
        %v956 = vunpack.c.l.b16 %v700
        %v957 = vunpack.c.l.b16 %v701
        %v958 = vunpack.c.l.b16 %v702
        %v959 = vunpack.c.l.b16 %v703
        %v960 = vunpack.c.l.b16 %v704
        %v961 = vunpack.c.l.b16 %v705
        %v962 = vunpack.c.l.b16 %v706
        %v963 = vunpack.c.l.b16 %v707
        %v964 = vunpack.c.l.b16 %v708
        %v965 = vunpack.c.l.b16 %v709
        %v966 = vunpack.c.l.b16 %v710
        %v967 = vunpack.c.l.b16 %v711
        %v968 = vunpack.c.l.b16 %v712
        %v969 = vunpack.c.l.b16 %v713
        %v970 = vunpack.c.l.b16 %v714
        %v971 = vunpack.c.l.b16 %v715
        %v972 = vunpack.c.l.b16 %v716
        %v973 = vunpack.c.l.b16 %v717
        %v974 = vunpack.c.l.b16 %v718
        %v975 = vunpack.c.l.b16 %v719
        %v976 = vpack.c.b16 %v849, %v848
        %v977 = vpack.c.b16 %v851, %v850
        %v978 = vpack.c.b16 %v853, %v852
        %v979 = vpack.c.b16 %v855, %v854
        %v980 = vpack.c.b16 %v857, %v856
        %v981 = vpack.c.b16 %v859, %v858
        %v982 = vpack.c.b16 %v861, %v860
        %v983 = vpack.c.b16 %v863, %v862
        %v984 = vpack.c.b16 %v865, %v864
        %v985 = vpack.c.b16 %v867, %v866
        %v986 = vpack.c.b16 %v869, %v868
        %v987 = vpack.c.b16 %v871, %v870
        %v988 = vpack.c.b16 %v873, %v872
        %v989 = vpack.c.b16 %v875, %v874
        %v990 = vpack.c.b16 %v877, %v876
        %v991 = vpack.c.b16 %v879, %v878
        %v992 = vpack.c.b16 %v881, %v880
        %v993 = vpack.c.b16 %v883, %v882
        %v994 = vpack.c.b16 %v885, %v884
        %v995 = vpack.c.b16 %v887, %v886
        %v996 = vpack.c.b16 %v889, %v888
        %v997 = vpack.c.b16 %v891, %v890
        %v998 = vpack.c.b16 %v893, %v892
        %v999 = vpack.c.b16 %v895, %v894
        %v1000 = vpack.c.b16 %v897, %v896
        %v1001 = vpack.c.b16 %v899, %v898
        %v1002 = vpack.c.b16 %v901, %v900
        %v1003 = vpack.c.b16 %v903, %v902
        %v1004 = vpack.c.b16 %v905, %v904
        %v1005 = vpack.c.b16 %v907, %v906
        %v1006 = vpack.c.b16 %v909, %v908
        %v1007 = vpack.c.b16 %v911, %v910
        %v1008 = vpack.c.b16 %v913, %v912
        %v1009 = vpack.c.b16 %v915, %v914
        %v1010 = vpack.c.b16 %v917, %v916
        %v1011 = vpack.c.b16 %v919, %v918
        %v1012 = vpack.c.b16 %v921, %v920
        %v1013 = vpack.c.b16 %v923, %v922
        %v1014 = vpack.c.b16 %v925, %v924
        %v1015 = vpack.c.b16 %v927, %v926
        %v1016 = vpack.c.b16 %v929, %v928
        %v1017 = vpack.c.b16 %v931, %v930
        %v1018 = vpack.c.b16 %v933, %v932
        %v1019 = vpack.c.b16 %v935, %v934
        %v1020 = vpack.c.b16 %v937, %v936
        %v1021 = vpack.c.b16 %v939, %v938
        %v1022 = vpack.c.b16 %v941, %v940
        %v1023 = vpack.c.b16 %v943, %v942
        %v1024 = vpack.c.b16 %v945, %v944
        %v1025 = vpack.c.b16 %v947, %v946
        %v1026 = vpack.c.b16 %v949, %v948
        %v1027 = vpack.c.b16 %v951, %v950
        %v1028 = vpack.c.b16 %v953, %v952
        %v1029 = vpack.c.b16 %v955, %v954
        %v1030 = vpack.c.b16 %v957, %v956
        %v1031 = vpack.c.b16 %v959, %v958
        %v1032 = vpack.c.b16 %v961, %v960
        %v1033 = vpack.c.b16 %v963, %v962
        %v1034 = vpack.c.b16 %v965, %v964
        %v1035 = vpack.c.b16 %v967, %v966
        %v1036 = vpack.c.b16 %v969, %v968
        %v1037 = vpack.c.b16 %v971, %v970
        %v1038 = vpack.c.b16 %v973, %v972
        %v1039 = vpack.c.b16 %v975, %v974
        %1104 = vmatprep.subr.bf16.mxu0 0
        %1105 = vmatpush1.bf16.msra.mxu0 %v976
        %1106 = vmatprep.subr.bf16.mxu0 0
        %1107 = vmatpush1.bf16.msra.mxu0 %v977
        %1108 = vmatprep.subr.bf16.mxu0 0
        %1109 = vmatpush1.bf16.msra.mxu0 %v978
        %1110 = vmatprep.subr.bf16.mxu0 0
        %1111 = vmatpush1.bf16.msra.mxu0 %v979
        %1112 = vmatprep.subr.bf16.mxu0 0
        %1113 = vmatpush1.bf16.msra.mxu0 %v980
        %1114 = vmatprep.subr.bf16.mxu0 0
        %1115 = vmatpush1.bf16.msra.mxu0 %v981
        %1116 = vmatprep.subr.bf16.mxu0 0
        %1117 = vmatpush1.bf16.msra.mxu0 %v982
        %1118 = vmatprep.subr.bf16.mxu0 0
        %1119 = vmatpush1.bf16.msra.mxu0 %v983
        %1120 = vmatprep.subr.bf16.mxu0 0
        %1121 = vmatpush1.bf16.msra.mxu0 %v984
        %1122 = vmatprep.subr.bf16.mxu0 0
        %1123 = vmatpush1.bf16.msra.mxu0 %v985
        %1124 = vmatprep.subr.bf16.mxu0 0
        %1125 = vmatpush1.bf16.msra.mxu0 %v986
        %1126 = vmatprep.subr.bf16.mxu0 0
        %1127 = vmatpush1.bf16.msra.mxu0 %v987
        %1128 = vmatprep.subr.bf16.mxu0 0
        %1129 = vmatpush1.bf16.msra.mxu0 %v988
        %1130 = vmatprep.subr.bf16.mxu0 0
        %1131 = vmatpush1.bf16.msra.mxu0 %v989
        %1132 = vmatprep.subr.bf16.mxu0 0
        %1133 = vmatpush1.bf16.msra.mxu0 %v990
        %1134 = vmatprep.subr.bf16.mxu0 0
        %1135 = vmatpush1.bf16.msra.mxu0 %v991
        %1136 = vmatprep.mubr.bf16.mxu0 %v584
        %1137 = vmatmul.mubr.bf16.gmra.mrb[0].mxu0 %v583
        %v1138 = vpop.f32.mrb[0].mxu0
        %v1139 = vadd.f32 0.0, %v1138
        %v1140 = vpop.f32.mrb[0].mxu0
        %v1141 = vpop.f32.mrb[0].mxu0
        %v1142 = vpop.f32.mrb[0].mxu0
        %1143 = vdwg.mxu0
        %1144 = vmatprep.subr.bf16.mxu0 0
        %1145 = vmatpush1.bf16.msra.mxu0 %v992
        %1146 = vmatprep.subr.bf16.mxu0 0
        %1147 = vmatpush1.bf16.msra.mxu0 %v993
        %1148 = vmatprep.subr.bf16.mxu0 0
        %1149 = vmatpush1.bf16.msra.mxu0 %v994
        %1150 = vmatprep.subr.bf16.mxu0 0
        %1151 = vmatpush1.bf16.msra.mxu0 %v995
        %1152 = vmatprep.subr.bf16.mxu0 0
        %1153 = vmatpush1.bf16.msra.mxu0 %v996
        %1154 = vmatprep.subr.bf16.mxu0 0
        %1155 = vmatpush1.bf16.msra.mxu0 %v997
        %1156 = vmatprep.subr.bf16.mxu0 0
        %1157 = vmatpush1.bf16.msra.mxu0 %v998
        %1158 = vmatprep.subr.bf16.mxu0 0
        %1159 = vmatpush1.bf16.msra.mxu0 %v999
        %1160 = vmatprep.subr.bf16.mxu0 0
        %1161 = vmatpush1.bf16.msra.mxu0 %v1000
        %1162 = vmatprep.subr.bf16.mxu0 0
        %1163 = vmatpush1.bf16.msra.mxu0 %v1001
        %1164 = vmatprep.subr.bf16.mxu0 0
        %1165 = vmatpush1.bf16.msra.mxu0 %v1002
        %1166 = vmatprep.subr.bf16.mxu0 0
        %1167 = vmatpush1.bf16.msra.mxu0 %v1003
        %1168 = vmatprep.subr.bf16.mxu0 0
        %1169 = vmatpush1.bf16.msra.mxu0 %v1004
        %1170 = vmatprep.subr.bf16.mxu0 0
        %1171 = vmatpush1.bf16.msra.mxu0 %v1005
        %1172 = vmatprep.subr.bf16.mxu0 0
        %1173 = vmatpush1.bf16.msra.mxu0 %v1006
        %1174 = vmatprep.subr.bf16.mxu0 0
        %1175 = vmatpush1.bf16.msra.mxu0 %v1007
        %1176 = vmatprep.mubr.bf16.mxu0 %v586
        %1177 = vmatmul.mubr.bf16.gmra.mrb[0].mxu0 %v585
        %v1178 = vpop.f32.mrb[0].mxu0
        %v1179 = vadd.f32 %v1139, %v1178
        %v1180 = vpop.f32.mrb[0].mxu0
        %v1181 = vpop.f32.mrb[0].mxu0
        %v1182 = vpop.f32.mrb[0].mxu0
        %1183 = vdwg.mxu0
        %1184 = vmatprep.subr.bf16.mxu0 0
        %1185 = vmatpush1.bf16.msra.mxu0 %v1008
        %1186 = vmatprep.subr.bf16.mxu0 0
        %1187 = vmatpush1.bf16.msra.mxu0 %v1009
        %1188 = vmatprep.subr.bf16.mxu0 0
        %1189 = vmatpush1.bf16.msra.mxu0 %v1010
        %1190 = vmatprep.subr.bf16.mxu0 0
        %1191 = vmatpush1.bf16.msra.mxu0 %v1011
        %1192 = vmatprep.subr.bf16.mxu0 0
        %1193 = vmatpush1.bf16.msra.mxu0 %v1012
        %1194 = vmatprep.subr.bf16.mxu0 0
        %1195 = vmatpush1.bf16.msra.mxu0 %v1013
        %1196 = vmatprep.subr.bf16.mxu0 0
        %1197 = vmatpush1.bf16.msra.mxu0 %v1014
        %1198 = vmatprep.subr.bf16.mxu0 0
        %1199 = vmatpush1.bf16.msra.mxu0 %v1015
        %1200 = vmatprep.subr.bf16.mxu0 0
        %1201 = vmatpush1.bf16.msra.mxu0 %v1016
        %1202 = vmatprep.subr.bf16.mxu0 0
        %1203 = vmatpush1.bf16.msra.mxu0 %v1017
        %1204 = vmatprep.subr.bf16.mxu0 0
        %1205 = vmatpush1.bf16.msra.mxu0 %v1018
        %1206 = vmatprep.subr.bf16.mxu0 0
        %1207 = vmatpush1.bf16.msra.mxu0 %v1019
        %1208 = vmatprep.subr.bf16.mxu0 0
        %1209 = vmatpush1.bf16.msra.mxu0 %v1020
        %1210 = vmatprep.subr.bf16.mxu0 0
        %1211 = vmatpush1.bf16.msra.mxu0 %v1021
        %1212 = vmatprep.subr.bf16.mxu0 0
        %1213 = vmatpush1.bf16.msra.mxu0 %v1022
        %1214 = vmatprep.subr.bf16.mxu0 0
        %1215 = vmatpush1.bf16.msra.mxu0 %v1023
        %1216 = vmatprep.mubr.bf16.mxu0 %v588
        %1217 = vmatmul.mubr.bf16.gmra.mrb[0].mxu0 %v587
        %v1218 = vpop.f32.mrb[0].mxu0
        %v1219 = vadd.f32 %v1179, %v1218
        %v1220 = vpop.f32.mrb[0].mxu0
        %v1221 = vpop.f32.mrb[0].mxu0
        %v1222 = vpop.f32.mrb[0].mxu0
        %1223 = vdwg.mxu0
        %1224 = vmatprep.subr.bf16.mxu0 0
        %1225 = vmatpush1.bf16.msra.mxu0 %v1024
        %1226 = vmatprep.subr.bf16.mxu0 0
        %1227 = vmatpush1.bf16.msra.mxu0 %v1025
        %1228 = vmatprep.subr.bf16.mxu0 0
        %1229 = vmatpush1.bf16.msra.mxu0 %v1026
        %1230 = vmatprep.subr.bf16.mxu0 0
        %1231 = vmatpush1.bf16.msra.mxu0 %v1027
        %1232 = vmatprep.subr.bf16.mxu0 0
        %1233 = vmatpush1.bf16.msra.mxu0 %v1028
        %1234 = vmatprep.subr.bf16.mxu0 0
        %1235 = vmatpush1.bf16.msra.mxu0 %v1029
        %1236 = vmatprep.subr.bf16.mxu0 0
        %1237 = vmatpush1.bf16.msra.mxu0 %v1030
        %1238 = vmatprep.subr.bf16.mxu0 0
        %1239 = vmatpush1.bf16.msra.mxu0 %v1031
        %1240 = vmatprep.subr.bf16.mxu0 0
        %1241 = vmatpush1.bf16.msra.mxu0 %v1032
        %1242 = vmatprep.subr.bf16.mxu0 0
        %1243 = vmatpush1.bf16.msra.mxu0 %v1033
        %1244 = vmatprep.subr.bf16.mxu0 0
        %1245 = vmatpush1.bf16.msra.mxu0 %v1034
        %1246 = vmatprep.subr.bf16.mxu0 0
        %1247 = vmatpush1.bf16.msra.mxu0 %v1035
        %1248 = vmatprep.subr.bf16.mxu0 0
        %1249 = vmatpush1.bf16.msra.mxu0 %v1036
        %1250 = vmatprep.subr.bf16.mxu0 0
        %1251 = vmatpush1.bf16.msra.mxu0 %v1037
        %1252 = vmatprep.subr.bf16.mxu0 0
        %1253 = vmatpush1.bf16.msra.mxu0 %v1038
        %1254 = vmatprep.subr.bf16.mxu0 0
        %1255 = vmatpush1.bf16.msra.mxu0 %v1039
        %1256 = vmatprep.mubr.bf16.mxu0 %v590
        %1257 = vmatmul.mubr.bf16.gmra.mrb[0].mxu0 %v589
        %v1258 = vpop.f32.mrb[0].mxu0
        %v1259 = vadd.f32 %v1219, %v1258
        %v1260 = vpop.f32.mrb[0].mxu0
        %v1261 = vpop.f32.mrb[0].mxu0
        %v1262 = vpop.f32.mrb[0].mxu0
        %1263 = vdwg.mxu0
        %v1264 = vadd.f32 %v591, %v1259
        %vm1265 = vcmask 523264
        %1266 = vst.msk [vmem:[#allocation2] sm:$0xff] %vm1265, %v1264
        %p1267 = scmp.eq.s32.totalorder %s23, 1
        // Predicated region
        $region41: #{tpu_custom_call.1} parent=35 // pred_check
          %p1268 = pneg %p1267
        $region42: #{tpu_custom_call.1} parent=35 // pred_check_branch
          %1270 = sbr.rel (%p1268) target = $region44
        $region43: #{tpu_custom_call.1} parent=35 // pred_region
          %v1271 = vld [vmem:[#allocation2] sm:$0xff]
          %v1272 = vmul.f32 %v1271, 0.125
          %v1273 = vld [vmem:[%s2] sm:$0xff]
          %v1274 = vld [vmem:[%s2 + $0x8] sm:$0xff]
          %v1275 = vld [vmem:[%s2 + $0x10] sm:$0xff]
          %v1276 = vld [vmem:[%s2 + $0x18] sm:$0xff]
          %v1277 = vld [vmem:[%s2 + $0x20] sm:$0xff]
          %v1278 = vld [vmem:[%s2 + $0x28] sm:$0xff]
          %v1279 = vld [vmem:[%s2 + $0x30] sm:$0xff]
          %v1280 = vld [vmem:[%s2 + $0x38] sm:$0xff]
          %v1281 = vld [vmem:[%s3] sm:$0x1]
          %v1283 = vlaneseq
          %v1284 = vshrl.u32 %v1283, 7
          %v1285 = vsub.s32 0, %v1284
          %v1286 = vrot.slane %v1281, %v1285
          %v1289 = vsel %vm1265, %v1272, 0
          %1291 = vmatprep.subr.mxu0 0.0
          %1292 = vmatpush1.msra.mxu0 %v1273
          %1293 = vmatprep.subr.mxu0 0.0
          %1294 = vmatpush1.msra.mxu0 %v1274
          %1295 = vmatprep.subr.mxu0 0.0
          %1296 = vmatpush1.msra.mxu0 %v1275
          %1297 = vmatprep.subr.mxu0 0.0
          %1298 = vmatpush1.msra.mxu0 %v1276
          %1299 = vmatprep.subr.mxu0 0.0
          %1300 = vmatpush1.msra.mxu0 %v1277
          %1301 = vmatprep.subr.mxu0 0.0
          %1302 = vmatpush1.msra.mxu0 %v1278
          %1303 = vmatprep.subr.mxu0 0.0
          %1304 = vmatpush1.msra.mxu0 %v1279
          %1305 = vmatprep.subr.mxu0 0.0
          %1306 = vmatpush1.msra.mxu0 %v1280
          %1307 = vmatprep.subr.mxu0 0.0
          %1308 = vmatpush1.msra.mxu0 0.0
          %1309 = vmatprep.subr.mxu0 0.0
          %1310 = vmatpush1.msra.mxu0 0.0
          %1311 = vmatprep.subr.mxu0 0.0
          %1312 = vmatpush1.msra.mxu0 0.0
          %1313 = vmatprep.subr.mxu0 0.0
          %1314 = vmatpush1.msra.mxu0 0.0
          %1315 = vmatprep.subr.mxu0 0.0
          %1316 = vmatpush1.msra.mxu0 0.0
          %1317 = vmatprep.subr.mxu0 0.0
          %1318 = vmatpush1.msra.mxu0 0.0
          %1319 = vmatprep.subr.mxu0 0.0
          %1320 = vmatpush1.msra.mxu0 0.0
          %1321 = vmatprep.subr.mxu0 0.0
          %1322 = vmatpush1.msra.mxu0 0.0
          %1323 = vmatprep.subr.mxu0 0.0
          %1324 = vmatpush1.msra.mxu0 0.0
          %1325 = vmatprep.subr.mxu0 0.0
          %1326 = vmatpush1.msra.mxu0 0.0
          %1327 = vmatprep.subr.mxu0 0.0
          %1328 = vmatpush1.msra.mxu0 0.0
          %1329 = vmatprep.subr.mxu0 0.0
          %1330 = vmatpush1.msra.mxu0 0.0
          %1331 = vmatprep.subr.mxu0 0.0
          %1332 = vmatpush1.msra.mxu0 0.0
          %1333 = vmatprep.subr.mxu0 0.0
          %1334 = vmatpush1.msra.mxu0 0.0
          %1335 = vmatprep.subr.mxu0 0.0
          %1336 = vmatpush1.msra.mxu0 0.0
          %1337 = vmatprep.subr.mxu0 0.0
          %1338 = vmatpush1.msra.mxu0 0.0
          %1339 = vmatprep.subr.mxu0 0.0
          %1340 = vmatpush1.msra.mxu0 0.0
          %1341 = vmatprep.subr.mxu0 0.0
          %1342 = vmatpush1.msra.mxu0 0.0
          %1343 = vmatprep.subr.mxu0 0.0
          %1344 = vmatpush1.msra.mxu0 0.0
          %1345 = vmatprep.subr.mxu0 0.0
          %1346 = vmatpush1.msra.mxu0 0.0
          %1347 = vmatprep.subr.mxu0 0.0
          %1348 = vmatpush1.msra.mxu0 0.0
          %1349 = vmatprep.subr.mxu0 0.0
          %1350 = vmatpush1.msra.mxu0 0.0
          %1351 = vmatprep.subr.mxu0 0.0
          %1352 = vmatpush1.msra.mxu0 0.0
          %1353 = vmatprep.subr.mxu0 0.0
          %1354 = vmatpush1.msra.mxu0 0.0
          %1355 = vmatprep.mubr.f32.mxu0 0.0
          %1356 = vmatmul.mubr.f32.gmra.mrb[0].mxu0 %v1289
          %v1357 = vpop.f32.mrb[0].mxu0
          %v1358 = vadd.f32 %v1286, %v1357
          %v1359 = vpop.f32.mrb[0].mxu0
          %1360 = vdwg.mxu0
          %1361 = vst [vmem:[%s216] sm:$0xff] %v1358
        $region44: #{tpu_custom_call.1} parent=35 // pred_fallthru
          _
        %s1362 = sand.u32 %s132, 1
        %s1363 = scalar_lea.sflag [#allocation4], %s1362
        %s1364 = sand.u32 %s132, 1
        %s1365 = smul.addr %s1364, 8
        %s1366 = scalar_lea.vmem [#allocation3], %s1365
        // Predicated region
        $region45: #{tpu_custom_call.1} parent=35 // pred_check
          %p1367 = pneg %p142
        $region46: #{tpu_custom_call.1} parent=35 // pred_check_branch
          %1369 = sbr.rel (%p1367) target = $region48
        $region47: #{tpu_custom_call.1} parent=35 // pred_region
          %s1371 = ssub.s32 128, 128
          %1372 = vsyncadd %s1363, %s1371
          %s1373 = smul.addr %s22, 128
          %s1374 = scalar_lea.hbm %s4, %s1373
          %s1376 = sshll.u32 %s1366, 4
          %s1377 = int_to_ptr.vmem [resolvable:$true] %s1376
          %1379 = dma.vmem_to_hbm [thread:$0]  %s1377, 128, %s1374, %s1363
        $region48: #{tpu_custom_call.1} parent=35 // pred_fallthru
          _
      $region36: #{tpu_custom_call.1} parent=5 // pred_fallthru
        _
      %p1380 = scmp.le.s32.totalorder 2, %s13
      // Predicated region
      $region49: #{tpu_custom_call.1} parent=5 // pred_check
        %p1381 = pneg %p1380
      $region50: #{tpu_custom_call.1} parent=5 // pred_check_branch
        %1383 = sbr.rel (%p1381) target = $region52
      $region51: #{tpu_custom_call.1} parent=5 // pred_region
        %s1384 = ssub.s32 %s13, 2
        // Predicated region
        $region53: #{tpu_custom_call.1} parent=51 // pred_check
          %p1385 = pneg %p148
        $region54: #{tpu_custom_call.1} parent=51 // pred_check_branch
          %1387 = sbr.rel (%p1385) target = $region56
        $region55: #{tpu_custom_call.1} parent=51 // pred_region
          %s1388 = sand.u32 %s133, 1
          %s1389 = scalar_lea.sflag [#allocation4], %s1388
          %s1390 = sand.u32 %s133, 1
          %s1391 = smul.addr %s1390, 8
          %s1392 = scalar_lea.vmem [#allocation3], %s1391
          %1393 = dma.done %s1389, 128
        $region56: #{tpu_custom_call.1} parent=51 // pred_fallthru
          _
      $region52: #{tpu_custom_call.1} parent=5 // pred_fallthru
        _
    $region6: #{tpu_custom_call.1} parent=1 // loop_footer
      %s17 = sadd.s32 1, %s13
    $region7: #{tpu_custom_call.1} parent=1 // loop_footer_branch
      %12 = sbr.rel target = $region3
    $region8: #{tpu_custom_call.1} parent=1 // loop_exit
      _
    %1394 = vsyncpa [#allocation4], 1
    %s1395 = scalar_lea.sflag [#allocation4], 1
    %1396 = vsyncpa %s1395, 1

</llo_original>
